<compile_context>
chip_gen: v5e
topology: v5e:2x2
jax: 0.10.0
libtpu: 0.0.40
codegen_flags: <defaults>
</compile_context>

<pallas_src>
import jax
import jax.numpy as jnp
from jax.experimental import pallas as pl
from jax.experimental.pallas import tpu as pltpu


def _normalize_kernel(img_ref, scale_ref, bias_ref, out_ref):
    # img_ref/out_ref: (block_rows, block_cols) in VMEM (image dtype)
    # scale_ref/bias_ref: (block_rows, 1) float32 in VMEM, broadcast across lanes
    x = img_ref[...]
    out_ref[...] = (x * scale_ref[...] + bias_ref[...]).astype(out_ref.dtype)


def _pick_tile(dim, target, align):
    """Full extent if the dim is small, else an `align`-aligned tile <= target."""
    if dim <= target:
        return dim  # equal to the full array dim -> always a legal block shape
    return max((target // align) * align, align)


def _align_down(x, align):
    return max((x // align) * align, align)


def normalization(img, mean, std):
    """img: (N, C, H, W); mean/std: (C,).

    Returns (img - mean[:, None, None]) / std[:, None, None].
    """
    N, C, H, W = img.shape
    rows = N * C
    cols = H * W

    # Lane-dense 2D view of the image (free for contiguous NCHW).
    img2 = img.reshape(rows, cols)

    # Fold subtract+divide into a fused multiply-add: y = x * (1/std) - mean/std.
    # Keep scale/bias in float32 (cast happens only at the output store).
    scale_c = 1.0 / std.astype(jnp.float32)
    bias_c = -mean.astype(jnp.float32) * scale_c
    scale = jnp.broadcast_to(scale_c[None, :], (N, C)).reshape(rows, 1)
    bias = jnp.broadcast_to(bias_c[None, :], (N, C)).reshape(rows, 1)

    itemsize = jnp.dtype(img.dtype).itemsize
    # Dtype-aware sublane alignment: 8 for f32, 16 for bf16, 32 for int8/fp8.
    row_align = 8 * max(1, 4 // itemsize)

    # Tile sizing: lane axis up to 8192 (multiple of 128), rows sized so one
    # block is ~4 MB. Double-buffered in+out is then ~16 MB of VMEM.
    target_block_bytes = 4 * 1024 * 1024
    bc = _pick_tile(cols, 8192, 128)
    target_rows = max(row_align, target_block_bytes // (bc * itemsize))
    target_rows = max(row_align, (target_rows // row_align) * row_align)
    br = _pick_tile(rows, target_rows, row_align)

    # Ensure >=2 blocks on a parallel axis when one block would cover a
    # non-trivial array, so both v7x TensorCores get work.
    if rows <= br and cols <= bc and rows * cols * itemsize > (1 << 20):
        if rows >= 2 * row_align:
            br = _align_down(pl.cdiv(rows, 2), row_align)
        elif cols >= 2 * 128:
            bc = _align_down(pl.cdiv(cols, 2), 128)

    grid = (pl.cdiv(rows, br), pl.cdiv(cols, bc))

    # Explicit VMEM budget: double-buffered img-in + img-out blocks plus the
    # tiny f32 scale/bias blocks, with headroom. Clamped to stay safe on
    # v7x's 64 MiB physical VMEM while lifting v5e's 16 MiB scoped default.
    block_bytes = br * bc * itemsize
    needed = 2 * 2 * block_bytes + 2 * 2 * br * 4
    vmem_limit = min(max(needed + (4 << 20), 32 << 20), 48 << 20)

    cost = pl.CostEstimate(
        flops=2 * rows * cols,
        bytes_accessed=2 * rows * cols * itemsize + 2 * rows * 4,
        transcendentals=0,
    )

    out2 = pl.pallas_call(
        _normalize_kernel,
        out_shape=jax.ShapeDtypeStruct((rows, cols), img.dtype),
        grid_spec=pltpu.PrefetchScalarGridSpec(
            num_scalar_prefetch=0,
            grid=grid,
            in_specs=[
                pl.BlockSpec((br, bc), lambda r, c: (r, c)),
                pl.BlockSpec((br, 1), lambda r, c: (r, 0)),
                pl.BlockSpec((br, 1), lambda r, c: (r, 0)),
            ],
            out_specs=pl.BlockSpec((br, bc), lambda r, c: (r, c)),
        ),
        compiler_params=pltpu.CompilerParams(
            dimension_semantics=("parallel", "parallel"),
            vmem_limit_bytes=vmem_limit,
        ),
        cost_estimate=cost,
    )(img2, scale, bias)

    return out2.reshape(N, C, H, W)


if __name__ == "__main__":
    key = jax.random.PRNGKey(0)
    k_img, k_mean, k_std = jax.random.split(key, 3)

    N, C, H, W = 2, 4, 16, 16
    img = jax.random.normal(k_img, (N, C, H, W), dtype=jnp.float32)
    # Deterministic per-channel mean/std (std strictly positive).
    mean = jax.random.normal(k_mean, (C,), dtype=jnp.float32) * 0.1 + 0.5
    std = jax.random.uniform(k_std, (C,), dtype=jnp.float32, minval=0.2, maxval=1.0)

    out = normalization(img, mean, std)
    jax.block_until_ready(out)

    # Reference check against the PyTorch broadcasting semantics.
    ref = (img - mean.reshape(-1, 1, 1)) / std.reshape(-1, 1, 1)
    assert out.shape == (N, C, H, W)
    assert jnp.allclose(out, ref, atol=1e-5, rtol=1e-5)

    print("KERNEL_OK")
</pallas_src>

<mosaic_0001>
module attributes {stable_mosaic.version = 11 : i64} {
  func.func @_normalize_kernel(%arg0: i32, %arg1: i32, %arg2: memref<8x256xf32, #tpu.memory_space<vmem>>, %arg3: memref<8x1xf32, #tpu.memory_space<vmem>>, %arg4: memref<8x1xf32, #tpu.memory_space<vmem>>, %arg5: memref<8x256xf32, #tpu.memory_space<vmem>>) attributes {dimension_semantics = [#tpu.dimension_semantics<parallel>, #tpu.dimension_semantics<parallel>], iteration_bounds = array<i64: 1, 1>, scalar_prefetch = 0 : i64, scratch_operands = 0 : i64, tpu.core_type = #tpu.core_type<tc>, window_params = [{transform_indices = @transform_0, window_bounds = array<i64: 8, 256>}, {transform_indices = @transform_1, window_bounds = array<i64: 8, 1>}, {transform_indices = @transform_2, window_bounds = array<i64: 8, 1>}, {transform_indices = @transform_3, window_bounds = array<i64: 8, 256>}]} {
    %c0 = arith.constant 0 : index
    %c0_0 = arith.constant 0 : index
    %0 = vector.load %arg2[%c0, %c0_0] : memref<8x256xf32, #tpu.memory_space<vmem>>, vector<8x256xf32>
    %c0_1 = arith.constant 0 : index
    %c0_2 = arith.constant 0 : index
    %1 = vector.load %arg3[%c0_1, %c0_2] : memref<8x1xf32, #tpu.memory_space<vmem>>, vector<8x1xf32>
    %2 = vector.broadcast %1 : vector<8x1xf32> to vector<8x256xf32>
    %3 = arith.mulf %0, %2 : vector<8x256xf32>
    %c0_3 = arith.constant 0 : index
    %c0_4 = arith.constant 0 : index
    %4 = vector.load %arg4[%c0_3, %c0_4] : memref<8x1xf32, #tpu.memory_space<vmem>>, vector<8x1xf32>
    %5 = vector.broadcast %4 : vector<8x1xf32> to vector<8x256xf32>
    %6 = arith.addf %3, %5 : vector<8x256xf32>
    %c0_5 = arith.constant 0 : index
    %c0_6 = arith.constant 0 : index
    %7 = vector.load %arg5[%c0_5, %c0_6] : memref<8x256xf32, #tpu.memory_space<vmem>>, vector<8x256xf32>
    tpu.vector_store %arg5[%c0_5, %c0_6], %6 {strides = array<i32>} : memref<8x256xf32, #tpu.memory_space<vmem>>, vector<8x256xf32>,
    return
  }
  func.func @transform_0(%arg0: i32, %arg1: i32) -> (i32, i32) {
    %c0_i32 = arith.constant 0 : i32
    return %arg0, %arg1 : i32, i32
  }
  func.func @transform_1(%arg0: i32, %arg1: i32) -> (i32, i32) {
    %c0_i32 = arith.constant 0 : i32
    %c0_i32_0 = arith.constant 0 : i32
    return %arg0, %c0_i32 : i32, i32
  }
  func.func @transform_2(%arg0: i32, %arg1: i32) -> (i32, i32) {
    %c0_i32 = arith.constant 0 : i32
    %c0_i32_0 = arith.constant 0 : i32
    return %arg0, %c0_i32 : i32, i32
  }
  func.func @transform_3(%arg0: i32, %arg1: i32) -> (i32, i32) {
    %c0_i32 = arith.constant 0 : i32
    return %arg0, %arg1 : i32, i32
  }
}

</mosaic_0001>

<llo_original>
// kernel: tpu_custom_call.1
$region0: #{tpu_custom_call.1}
  #allocation0 [shape = 'u32[]', space=smem, size = 0x4, offset = 0x4, fixed_abs, tag = 'smem constant byte address 0x4 - core index']
  #allocation1 [shape = 'u32[72,128]{1,0:T(1,128)}', space=vmem, size = 0x9000, scoped, tag = 'internal scratch']
  %s0 = inlined_call_operand.vmem [shape: f32[8,256], index: 0, kind: input, shape index: {}]
  %s1 = inlined_call_operand.vmem [shape: f32[8,1], index: 1, kind: input, shape index: {}]
  %s2 = inlined_call_operand.vmem [shape: f32[8,1], index: 2, kind: input, shape index: {}]
  %s3 = inlined_call_operand.hbm [shape: f32[8,256], index: 3, kind: output, shape index: {}]
  %s4 = sld [smem:[#allocation0]]
  $region22: #{tpu_custom_call.1} parent=0
    _
  %s6 = ssub.s32 1, %s4
  %s7 = scalar_select 0, %s6, %s4
  $region1: #{tpu_custom_call.1} parent=0
    #allocation2 [shape = 'u8[8192]{0}', space=vmem, size = 0x2000, scoped, tag = 'output window, operand 0, single buffered']
    #allocation3 [shape = 's32[1]{0}', space=sflag, size = 0x4, scoped, tag = 'scoped memory for tpu_custom_call.1']
    %8 = vsyncpa [#allocation3], 0
    // Predicated region
    $region2: #{tpu_custom_call.1} parent=1 // pred_check
      _
    $region3: #{tpu_custom_call.1} parent=1 // pred_check_branch
      %10 = sbr.rel (0) target = $region5
    $region4: #{tpu_custom_call.1} parent=1 // pred_region
      _
    $region5: #{tpu_custom_call.1} parent=1 // pred_fallthru
      _
    // Predicated region
    $region6: #{tpu_custom_call.1} parent=1 // pred_check
      _
    $region7: #{tpu_custom_call.1} parent=1 // pred_check_branch
      %12 = sbr.rel (0) target = $region9
    $region8: #{tpu_custom_call.1} parent=1 // pred_region
      _
    $region9: #{tpu_custom_call.1} parent=1 // pred_fallthru
      _
    // Predicated region
    $region10: #{tpu_custom_call.1} parent=1 // pred_check
      _
    $region11: #{tpu_custom_call.1} parent=1 // pred_check_branch
      %14 = sbr.rel (0) target = $region13
    $region12: #{tpu_custom_call.1} parent=1 // pred_region
      _
    $region13: #{tpu_custom_call.1} parent=1 // pred_fallthru
      _
    %v15 = vld [vmem:[%s0] sm:$0xff]
    %v16 = vld [vmem:[%s0 + $0x8] sm:$0xff]
    %v17 = vld [vmem:[%s1] sm:$0xff]
    %19 = vset.pattern.permute.xlu0 0
    %20 = vperm.xlu0 %19, %v17
    %v21 = vpop.permute.xlu0 %20
    %v23 = vmul.f32 %v15, %v21
    %v24 = vmul.f32 %v16, %v21
    %v25 = vld [vmem:[%s2] sm:$0xff]
    %27 = vset.pattern.permute.xlu0 0
    %28 = vperm.xlu0 %27, %v25
    %v29 = vpop.permute.xlu0 %28
    %v31 = vadd.f32 %v23, %v29
    %v32 = vadd.f32 %v24, %v29
    %33 = vst [vmem:[#allocation2] sm:$0xff] %v31
    %34 = vst [vmem:[#allocation2 + $0x8] sm:$0xff] %v32
    // Predicated region
    $region14: #{tpu_custom_call.1} parent=1 // pred_check
      _
    $region15: #{tpu_custom_call.1} parent=1 // pred_check_branch
      %36 = sbr.rel (0) target = $region17
    $region16: #{tpu_custom_call.1} parent=1 // pred_region
      %38 = vsyncadd [#allocation3], 0
      %s40 = sshll.u32 [#allocation2], 4
      %s41 = int_to_ptr.vmem [resolvable:$true] %s40
      %s42 = sshll.u32 %s3, 4
      %s43 = int_to_ptr.hbm [resolvable:$true] %s42
      %45 = dma.vmem_to_hbm [thread:$0]  %s41, 256, %s43, [#allocation3]
    $region17: #{tpu_custom_call.1} parent=1 // pred_fallthru
      _
    // Predicated region
    $region18: #{tpu_custom_call.1} parent=1 // pred_check
      _
    $region19: #{tpu_custom_call.1} parent=1 // pred_check_branch
      %47 = sbr.rel (0) target = $region21
    $region20: #{tpu_custom_call.1} parent=1 // pred_region
      %49 = dma.done [#allocation3], 256
    $region21: #{tpu_custom_call.1} parent=1 // pred_fallthru
      _
    %50 = vsyncpa [#allocation3], 1

</llo_original>
